<compile_context>
chip_gen: v7x
topology: tpu7x:2x2x1
jax: 0.10.0
libtpu: 0.0.40
codegen_flags: <defaults>
</compile_context>

<pallas_src>
import jax
import jax.numpy as jnp
from jax.experimental import pallas as pl
from jax.experimental.pallas import tpu as pltpu


def _bf16_exp_supported():
    """v6e / v7x have a bf16-capable EUP/VPU; v5e and older do not."""
    try:
        kind = jax.devices()[0].device_kind.lower()
    except Exception:
        return False
    return not any(old in kind for old in ("v2", "v3", "v4", "v5"))


def _make_decay_kernel(compute_dtype):
    def _decay_kernel(coef_ref, x_ref, o_ref):
        # coef_ref: SMEM (3,) float32 scalars a, b, c.
        a = coef_ref[0].astype(compute_dtype)
        b = coef_ref[1].astype(compute_dtype)
        c = coef_ref[2].astype(compute_dtype)
        x = x_ref[...].astype(compute_dtype)
        # exp -> EUP slot, mul/add -> VPU slots; both hidden under the HBM DMA
        # for this memory-bound kernel.
        o_ref[...] = (a * jnp.exp(-b * x) + c).astype(o_ref.dtype)

    return _decay_kernel


def exp_decay_forward(x, coefficients, *, target_block_bytes=4 << 20):
    """Elementwise a*exp(-b*x)+c over an arbitrarily-shaped float array."""
    orig_shape = x.shape
    orig_dtype = x.dtype
    n = x.size
    itemsize = jnp.dtype(orig_dtype).itemsize

    coef_f32 = coefficients.astype(jnp.float32)

    # Compute dtype: bf16-native exp where the EUP supports it halves vreg
    # pressure and EUP pushes per byte; otherwise compute in f32.
    if orig_dtype == jnp.bfloat16 and _bf16_exp_supported():
        compute_dtype = jnp.bfloat16
    else:
        compute_dtype = jnp.float32

    x_flat = jnp.ravel(x)

    # Kernel covers the lane-divisible prefix (no pad copy); the <=127-element
    # tail (rare for real tensor shapes) is a tiny plain-XLA epilogue.
    n_main = (n // 128) * 128
    n_tail = n - n_main

    out_main = None
    if n_main > 0:
        # Widest lane width (multiple of 128) dividing the prefix -> reshape is
        # a free view of the contiguous buffer.
        lanes = 128
        for cand in (1024, 512, 256):
            if n_main % cand == 0:
                lanes = cand
                break
        rows = n_main // lanes
        x_main = x_flat if n_main == n else jax.lax.slice(x_flat, (0,), (n_main,))
        x2d = x_main.reshape(rows, lanes)

        bytes_per_row = lanes * itemsize
        target_rows = max(8, (target_block_bytes // bytes_per_row) // 8 * 8)
        if rows <= 8:
            tile_rows = rows  # single full-extent block (too small to split)
        else:
            # At least 2 row blocks so the "parallel" axis can be sharded across
            # both v7x TensorCores; cap blocks at ~target_block_bytes.
            half_up = max(8, (((rows + 1) // 2) + 7) // 8 * 8)
            tile_rows = min(target_rows, half_up)
        grid = (pl.cdiv(rows, tile_rows),)  # ragged last block handled by Pallas

        cost = pl.CostEstimate(
            flops=3 * n_main,
            transcendentals=n_main,
            bytes_accessed=2 * n_main * itemsize,
        )

        out2d = pl.pallas_call(
            _make_decay_kernel(compute_dtype),
            out_shape=jax.ShapeDtypeStruct((rows, lanes), orig_dtype),
            grid_spec=pl.GridSpec(
                grid=grid,
                in_specs=[
                    # (a, b, c) live in SMEM, read as scalars inside the kernel.
                    pl.BlockSpec(memory_space=pltpu.MemorySpace.SMEM),
                    pl.BlockSpec((tile_rows, lanes), lambda i: (i, 0)),
                ],
                out_specs=pl.BlockSpec((tile_rows, lanes), lambda i: (i, 0)),
            ),
            compiler_params=pltpu.CompilerParams(
                dimension_semantics=("parallel",),
                # Explicit scoped-VMEM budget: double-buffered in+out at 4 MiB
                # blocks (~16 MiB) exceeds v5e's 16 MiB scoped default but is
                # well within physical VMEM on every generation.
                vmem_limit_bytes=32 << 20,
            ),
            cost_estimate=cost,
        )(coef_f32, x2d)
        out_main = out2d.reshape(-1)

    if n_tail > 0:
        # Tiny (<128 element) tail: plain XLA, negligible next to the kernel.
        a, b, c = coef_f32[0], coef_f32[1], coef_f32[2]
        x_tail = jax.lax.slice(x_flat, (n_main,), (n,)).astype(jnp.float32)
        out_tail = (a * jnp.exp(-b * x_tail) + c).astype(orig_dtype)
        out_flat = out_tail if out_main is None else jnp.concatenate(
            [out_main, out_tail]
        )
    else:
        out_flat = out_main

    return out_flat.reshape(orig_shape)


def reference_forward(x, coefficients):
    a, b, c = coefficients.astype(jnp.float32)
    return (a * jnp.exp(-b * x.astype(jnp.float32)) + c).astype(x.dtype)


if __name__ == "__main__":
    key = jax.random.PRNGKey(0)
    k_coef, k_x1, k_x2, k_x3 = jax.random.split(key, 4)

    # "Parameters": Uniform(0, 0.1) sample of shape (3,), mirroring
    # torch.distributions.Uniform(0, 0.1).sample((3,)).
    coefficients = jax.random.uniform(
        k_coef, (3,), dtype=jnp.float32, minval=0.0, maxval=0.1
    )

    # Primary small NCHW-like input.
    x1 = jax.random.normal(k_x1, (2, 4, 16, 16), dtype=jnp.float32)
    # Exercises the multi-block (>=2 grid steps, megacore-splittable) path.
    x2 = jax.random.normal(k_x2, (4, 8, 64, 64), dtype=jnp.float32)
    # Lane-indivisible element count: kernel prefix + tiny XLA tail epilogue.
    x3 = jax.random.normal(k_x3, (5, 7, 9), dtype=jnp.float32)

    for x in (x1, x2, x3):
        out = jax.block_until_ready(exp_decay_forward(x, coefficients))
        ref = reference_forward(x, coefficients)
        assert out.shape == x.shape
        assert out.dtype == x.dtype
        assert jnp.allclose(out, ref, atol=1e-5, rtol=1e-5), "mismatch vs reference"

    print("KERNEL_OK")
</pallas_src>

<mosaic_0001>
module attributes {stable_mosaic.version = 11 : i64} {
  func.func @_decay_kernel(%arg0: i32, %arg1: memref<3xf32, #tpu.memory_space<smem>>, %arg2: memref<2x1024xf32, #tpu.memory_space<vmem>>, %arg3: memref<2x1024xf32, #tpu.memory_space<vmem>>) attributes {dimension_semantics = [#tpu.dimension_semantics<parallel>], iteration_bounds = array<i64: 1>, scalar_prefetch = 0 : i64, scratch_operands = 0 : i64, tpu.core_type = #tpu.core_type<tc>, window_params = [{transform_indices = @transform_0, window_bounds = array<i64: 3>}, {transform_indices = @transform_1, window_bounds = array<i64: 2, 1024>}, {transform_indices = @transform_2, window_bounds = array<i64: 2, 1024>}]} {
    %c0 = arith.constant 0 : index
    %0 = memref.load %arg1[%c0] : memref<3xf32, #tpu.memory_space<smem>>
    %c1 = arith.constant 1 : index
    %1 = memref.load %arg1[%c1] : memref<3xf32, #tpu.memory_space<smem>>
    %c2 = arith.constant 2 : index
    %2 = memref.load %arg1[%c2] : memref<3xf32, #tpu.memory_space<smem>>
    %c0_0 = arith.constant 0 : index
    %c0_1 = arith.constant 0 : index
    %3 = vector.load %arg2[%c0_0, %c0_1] : memref<2x1024xf32, #tpu.memory_space<vmem>>, vector<2x1024xf32>
    %cst = arith.constant 0.000000e+00 : f32
    %4 = arith.subf %cst, %1 : f32
    %5 = vector.broadcast %4 : f32 to vector<2x1024xf32>
    %6 = arith.mulf %5, %3 : vector<2x1024xf32>
    %7 = math.exp %6 : vector<2x1024xf32>
    %8 = vector.broadcast %0 : f32 to vector<2x1024xf32>
    %9 = arith.mulf %8, %7 : vector<2x1024xf32>
    %10 = vector.broadcast %2 : f32 to vector<2x1024xf32>
    %11 = arith.addf %9, %10 : vector<2x1024xf32>
    %c0_2 = arith.constant 0 : index
    %c0_3 = arith.constant 0 : index
    %12 = vector.load %arg3[%c0_2, %c0_3] : memref<2x1024xf32, #tpu.memory_space<vmem>>, vector<2x1024xf32>
    tpu.vector_store %arg3[%c0_2, %c0_3], %11 {strides = array<i32>} : memref<2x1024xf32, #tpu.memory_space<vmem>>, vector<2x1024xf32>,
    return
  }
  func.func @transform_0(%arg0: i32) -> i32 {
    %c0_i32 = arith.constant 0 : i32
    %c0_i32_0 = arith.constant 0 : i32
    return %c0_i32 : i32
  }
  func.func @transform_1(%arg0: i32) -> (i32, i32) {
    %c0_i32 = arith.constant 0 : i32
    %c0_i32_0 = arith.constant 0 : i32
    return %arg0, %c0_i32 : i32, i32
  }
  func.func @transform_2(%arg0: i32) -> (i32, i32) {
    %c0_i32 = arith.constant 0 : i32
    %c0_i32_0 = arith.constant 0 : i32
    return %arg0, %c0_i32 : i32, i32
  }
}

</mosaic_0001>

<llo_original>
// kernel: tpu_custom_call.1
$region0: #{tpu_custom_call.1}
  #allocation0 [shape = 'u32[]', space=smem, size = 0x4, offset = 0x4, fixed_abs, tag = 'smem constant byte address 0x4 - core index']
  #allocation1 [shape = 'u32[144,128]{1,0:T(1,128)}', space=vmem, size = 0x12000, scoped, tag = 'internal scratch']
  %s0 = inlined_call_operand.hbm [shape: f32[3], index: 0, kind: input, shape index: {}]
  %s1 = inlined_call_operand.hbm [shape: f32[2,1024], index: 1, kind: input, shape index: {}]
  %s2 = inlined_call_operand.hbm [shape: f32[2,1024], index: 2, kind: output, shape index: {}]
  %s3 = sld [smem:[#allocation0]]
  $region26: #{tpu_custom_call.1} parent=0
    _
  %s5 = ssub.s32 1, %s3
  %s6 = scalar_select 0, %s5, %s3
  $region1: #{tpu_custom_call.1} parent=0
    #allocation2 [shape = 'u8[512]{0}', space=smem, size = 0x200, scoped, tag = 'input window, operand 0, single buffered']
    #allocation3 [shape = 's32[1]{0}', space=sflag, size = 0x4, scoped, tag = 'scoped memory for tpu_custom_call.1']
    #allocation4 [shape = 's32[1]{0}', space=sflag, size = 0x4, scoped, tag = 'scoped memory for tpu_custom_call.1']
    #allocation5 [shape = 's32[1]{0}', space=sflag, size = 0x4, scoped, tag = 'scoped memory for tpu_custom_call.1']
    #allocation6 [shape = 'u8[8192]{0}', space=vmem, size = 0x2000, scoped, tag = 'input window, operand 1, single buffered']
    #allocation7 [shape = 'u8[8192]{0}', space=vmem, size = 0x2000, scoped, tag = 'output window, operand 0, single buffered']
    %7 = vsyncpa [#allocation5], 0
    %8 = vsyncpa [#allocation3], 0
    %9 = vsyncpa [#allocation4], 0
    // Predicated region
    $region2: #{tpu_custom_call.1} parent=1 // pred_check
      _
    $region3: #{tpu_custom_call.1} parent=1 // pred_check_branch
      %11 = sbr.rel (0) target = $region5
    $region4: #{tpu_custom_call.1} parent=1 // pred_region
      %s13 = ssub.s32 16, 16
      %14 = vsyncadd [#allocation5], %s13
      %17 = dma.hbm_to_smem %s0, 16, [#allocation2], [#allocation5]
    $region5: #{tpu_custom_call.1} parent=1 // pred_fallthru
      _
    // Predicated region
    $region6: #{tpu_custom_call.1} parent=1 // pred_check
      _
    $region7: #{tpu_custom_call.1} parent=1 // pred_check_branch
      %19 = sbr.rel (0) target = $region9
    $region8: #{tpu_custom_call.1} parent=1 // pred_region
      %s21 = ssub.s32 256, 256
      %22 = vsyncadd [#allocation3], %s21
      %s24 = sshll.u32 [#allocation6], 4
      %s25 = int_to_ptr.vmem [resolvable:$true] %s24
      %27 = dma.hbm_to_vmem [thread:$0]  %s1, 256, %s25, [#allocation3]
    $region9: #{tpu_custom_call.1} parent=1 // pred_fallthru
      _
    // Predicated region
    $region10: #{tpu_custom_call.1} parent=1 // pred_check
      _
    $region11: #{tpu_custom_call.1} parent=1 // pred_check_branch
      %29 = sbr.rel (0) target = $region13
    $region12: #{tpu_custom_call.1} parent=1 // pred_region
      %30 = dma.done [#allocation5], 16
    $region13: #{tpu_custom_call.1} parent=1 // pred_fallthru
      _
    // Predicated region
    $region14: #{tpu_custom_call.1} parent=1 // pred_check
      _
    $region15: #{tpu_custom_call.1} parent=1 // pred_check_branch
      %32 = sbr.rel (0) target = $region17
    $region16: #{tpu_custom_call.1} parent=1 // pred_region
      %33 = dma.done [#allocation3], 256
    $region17: #{tpu_custom_call.1} parent=1 // pred_fallthru
      _
    %34 = sfence
    %s35 = sld [smem:[#allocation2]]
    %s36 = sld [smem:[#allocation2 + $0x1]]
    %s37 = sld [smem:[#allocation2 + $0x2]]
    %v38 = vld [vmem:[#allocation6] sm:$0xff]
    %v39 = vld [vmem:[#allocation6 + $0x8] sm:$0xff]
    %s40 = ssub.f32 0.0, %s36
    %v41 = vstv %s40
    %v42 = vmul.f32 %v41, %v38
    %v43 = vmul.f32 %v41, %v39
    %v44 = vmul.f32 %v42, 1.442695
    %v45 = vpow.pop %v44
    %v46 = vmul.f32 %v43, 1.442695
    %v47 = vpow.pop %v46
    %v48 = vstv %s35
    %v49 = vmul.f32 %v48, %v45
    %v50 = vmul.f32 %v48, %v47
    %v51 = vstv %s37
    %v52 = vadd.f32 %v49, %v51
    %v53 = vadd.f32 %v50, %v51
    %54 = vst [vmem:[#allocation7] sm:$0xff] %v52
    %55 = vst [vmem:[#allocation7 + $0x8] sm:$0xff] %v53
    // Predicated region
    $region18: #{tpu_custom_call.1} parent=1 // pred_check
      _
    $region19: #{tpu_custom_call.1} parent=1 // pred_check_branch
      %57 = sbr.rel (0) target = $region21
    $region20: #{tpu_custom_call.1} parent=1 // pred_region
      %s59 = ssub.s32 256, 256
      %60 = vsyncadd [#allocation4], %s59
      %s62 = sshll.u32 [#allocation7], 4
      %s63 = int_to_ptr.vmem [resolvable:$true] %s62
      %65 = dma.vmem_to_hbm [thread:$0]  %s63, 256, %s2, [#allocation4]
    $region21: #{tpu_custom_call.1} parent=1 // pred_fallthru
      _
    // Predicated region
    $region22: #{tpu_custom_call.1} parent=1 // pred_check
      _
    $region23: #{tpu_custom_call.1} parent=1 // pred_check_branch
      %67 = sbr.rel (0) target = $region25
    $region24: #{tpu_custom_call.1} parent=1 // pred_region
      %68 = dma.done [#allocation4], 256
    $region25: #{tpu_custom_call.1} parent=1 // pred_fallthru
      _
    %69 = vsyncpa [#allocation3], 1
    %70 = vsyncpa [#allocation4], 1
    %71 = vsyncpa [#allocation5], 1

</llo_original>
